<compile_context>
chip_gen: v7x
topology: tpu7x:2x2x1
jax: 0.10.0
libtpu: 0.0.40
codegen_flags: <defaults>
</compile_context>

<pallas_src>
import functools

import jax
import jax.numpy as jnp
from jax import lax
from jax.experimental import pallas as pl
from jax.experimental.pallas import tpu as pltpu


def focal_loss_kernel(logits_ref, targets_ref, loss_ref, *, alpha, gamma):
    """One batch tile: per-sample focal loss from raw logits.

    logits_ref : (TB, C) native dtype (f32 / bf16), cast to f32 on load.
    targets_ref: (TB, 1) int32 class ids.
    loss_ref   : (TB, 1) f32 per-sample focal loss.
    """
    logits = logits_ref[...].astype(jnp.float32)               # (TB, C)
    tgt = targets_ref[...]                                      # (TB, 1)

    # Numerically stable row-wise logsumexp (lane-axis reductions -> XLU).
    row_max = jnp.max(logits, axis=-1, keepdims=True)           # (TB, 1)
    shifted = logits - row_max
    lse = jnp.log(jnp.sum(jnp.exp(shifted), axis=-1, keepdims=True)) + row_max

    # Target-logit gather: 2-D iota compare + masked lane reduce (no scalar
    # gathers, no MXU one-hot matmul).
    cls_ids = lax.broadcasted_iota(jnp.int32, logits.shape, 1)  # (TB, C)
    onehot = cls_ids == tgt
    tgt_logit = jnp.sum(jnp.where(onehot, logits, 0.0), axis=-1, keepdims=True)

    ce = lse - tgt_logit                                        # (TB, 1), >= 0
    pt = jnp.exp(-ce)
    one_minus_pt = jnp.maximum(1.0 - pt, 0.0)                   # guard fp rounding
    if float(gamma).is_integer() and gamma >= 0:
        focal_w = lax.integer_pow(one_minus_pt, int(gamma))     # VPU multiplies
    else:
        focal_w = jnp.power(one_minus_pt, gamma)

    loss_ref[...] = alpha * focal_w * ce


def _pick_tile_b(b, c, itemsize):
    """Largest batch tile whose double-buffered logits DMA stays well inside the
    scoped-VMEM budget on every generation (v5e 16 MiB scoped default, v7x
    64 MiB physical), respecting the dtype's minimum sublane multiple."""
    min_rows = max(8, 32 // itemsize)            # f32: 8, bf16: 16, int8/fp8: 32
    per_buffer_budget = 8 * 1024 * 1024          # 2 buffers -> <=16 MiB for logits
    rows = per_buffer_budget // max(1, c * itemsize)
    rows = max(min_rows, min(2048, rows))
    rows = (rows // min_rows) * min_rows
    b_ceil = ((b + min_rows - 1) // min_rows) * min_rows
    return min(rows, b_ceil)


def focal_loss(logits, targets, *, alpha=1.0, gamma=2.0, reduce=True, tile_b=None):
    b, c = logits.shape
    itemsize = jnp.dtype(logits.dtype).itemsize
    if tile_b is None:
        tile_b = _pick_tile_b(b, c, itemsize)
    num_tiles = pl.cdiv(b, tile_b)

    # Tiny (b x 1) int32 side input; logits are passed through untouched.
    targets2d = targets.astype(jnp.int32).reshape(b, 1)

    kernel = functools.partial(
        focal_loss_kernel, alpha=float(alpha), gamma=float(gamma))

    per_sample = pl.pallas_call(
        kernel,
        out_shape=jax.ShapeDtypeStruct((b, 1), jnp.float32),
        grid=(num_tiles,),
        in_specs=[
            pl.BlockSpec((tile_b, c), lambda i: (i, 0)),   # logits tile (native dtype)
            pl.BlockSpec((tile_b, 1), lambda i: (i, 0)),   # targets tile
        ],
        out_specs=pl.BlockSpec((tile_b, 1), lambda i: (i, 0)),
        compiler_params=pltpu.CompilerParams(
            dimension_semantics=("parallel",),             # no cross-step state
            vmem_limit_bytes=32 * 1024 * 1024,
        ),
    )(logits, targets2d)

    if reduce:
        return jnp.mean(per_sample)          # b floats; negligible vs logits traffic
    return per_sample[:, 0]


def _focal_loss_ref(logits, targets, alpha=1.0, gamma=2.0, reduce=True):
    logp = jax.nn.log_softmax(logits.astype(jnp.float32), axis=-1)
    ce = -jnp.take_along_axis(logp, targets[:, None], axis=-1)[:, 0]
    pt = jnp.exp(-ce)
    fl = alpha * (1.0 - pt) ** gamma * ce
    return jnp.mean(fl) if reduce else fl


if __name__ == "__main__":
    key = jax.random.PRNGKey(0)
    k_logits, k_targets = jax.random.split(key)

    # Non-multiple-of-8 batch exercises the unpadded partial-block masking path.
    B, C = 13, 128
    logits = jax.random.normal(k_logits, (B, C), jnp.float32)
    targets = jax.random.randint(k_targets, (B,), 0, C, dtype=jnp.int32)

    loss = jax.jit(functools.partial(focal_loss, alpha=1.0, gamma=2.0,
                                     reduce=True))(logits, targets)
    per_sample = jax.jit(functools.partial(focal_loss, alpha=1.0, gamma=2.0,
                                           reduce=False))(logits, targets)
    # Native-dtype (bf16) DMA path: cast happens in-kernel after load.
    loss_bf16 = jax.jit(functools.partial(focal_loss, reduce=True))(
        logits.astype(jnp.bfloat16), targets)
    jax.block_until_ready((loss, per_sample, loss_bf16))

    ref_loss = _focal_loss_ref(logits, targets, reduce=True)
    ref_per = _focal_loss_ref(logits, targets, reduce=False)
    ref_loss_bf16 = _focal_loss_ref(logits.astype(jnp.bfloat16), targets, reduce=True)

    assert loss.shape == () and per_sample.shape == (B,)
    assert jnp.allclose(loss, ref_loss, atol=1e-4, rtol=1e-4)
    assert jnp.allclose(per_sample, ref_per, atol=1e-4, rtol=1e-4)
    assert jnp.allclose(loss_bf16, ref_loss_bf16, atol=1e-3, rtol=1e-3)
    print("KERNEL_OK")
</pallas_src>

<mosaic_0001>
module attributes {stable_mosaic.version = 11 : i64} {
  func.func @focal_loss_kernel(%arg0: i32, %arg1: memref<16x128xf32, #tpu.memory_space<vmem>>, %arg2: memref<16x1xi32, #tpu.memory_space<vmem>>, %arg3: memref<16x1xf32, #tpu.memory_space<vmem>>) attributes {dimension_semantics = [#tpu.dimension_semantics<parallel>], iteration_bounds = array<i64: 1>, scalar_prefetch = 0 : i64, scratch_operands = 0 : i64, tpu.core_type = #tpu.core_type<tc>, window_params = [{transform_indices = @transform_0, window_bounds = array<i64: 16, 128>}, {transform_indices = @transform_1, window_bounds = array<i64: 16, 1>}, {transform_indices = @transform_2, window_bounds = array<i64: 16, 1>}]} {
    %c0 = arith.constant 0 : index
    %c0_0 = arith.constant 0 : index
    %0 = vector.load %arg1[%c0, %c0_0] : memref<16x128xf32, #tpu.memory_space<vmem>>, vector<16x128xf32>
    %c0_1 = arith.constant 0 : index
    %c0_2 = arith.constant 0 : index
    %1 = vector.load %arg2[%c0_1, %c0_2] : memref<16x1xi32, #tpu.memory_space<vmem>>, vector<16x1xi32>
    %cst = arith.constant dense<0xFF800000> : vector<16xf32>
    %2 = vector.multi_reduction <maximumf>, %0, %cst [1] : vector<16x128xf32> to vector<16xf32>
    %3 = vector.shape_cast %2 : vector<16xf32> to vector<16x1xf32>
    %4 = vector.broadcast %3 : vector<16x1xf32> to vector<16x128xf32>
    %5 = arith.subf %0, %4 : vector<16x128xf32>
    %6 = math.exp %5 : vector<16x128xf32>
    %cst_3 = arith.constant dense<0.000000e+00> : vector<16xf32>
    %7 = vector.multi_reduction <add>, %6, %cst_3 [1] : vector<16x128xf32> to vector<16xf32>
    %8 = vector.shape_cast %7 : vector<16xf32> to vector<16x1xf32>
    %9 = math.log %8 : vector<16x1xf32>
    %10 = arith.addf %9, %3 : vector<16x1xf32>
    %11 = tpu.iota {dimensions = array<i32: 1>} : vector<16x128xi32>
    %12 = vector.broadcast %1 : vector<16x1xi32> to vector<16x128xi32>
    %13 = arith.cmpi eq, %11, %12 : vector<16x128xi32>
    %cst_4 = arith.constant 0.000000e+00 : f32
    %14 = vector.broadcast %cst_4 : f32 to vector<16x128xf32>
    %15 = arith.select %13, %0, %14 : vector<16x128xi1>, vector<16x128xf32>
    %cst_5 = arith.constant dense<0.000000e+00> : vector<16xf32>
    %16 = vector.multi_reduction <add>, %15, %cst_5 [1] : vector<16x128xf32> to vector<16xf32>
    %17 = vector.shape_cast %16 : vector<16xf32> to vector<16x1xf32>
    %18 = arith.subf %10, %17 : vector<16x1xf32>
    %cst_6 = arith.constant 0.000000e+00 : f32
    %19 = vector.broadcast %cst_6 : f32 to vector<16x1xf32>
    %20 = arith.subf %19, %18 : vector<16x1xf32>
    %21 = math.exp %20 : vector<16x1xf32>
    %cst_7 = arith.constant 1.000000e+00 : f32
    %22 = vector.broadcast %cst_7 : f32 to vector<16x1xf32>
    %23 = arith.subf %22, %21 : vector<16x1xf32>
    %cst_8 = arith.constant 0.000000e+00 : f32
    %24 = vector.broadcast %cst_8 : f32 to vector<16x1xf32>
    %25 = arith.maximumf %23, %24 : vector<16x1xf32>
    %26 = arith.mulf %25, %25 : vector<16x1xf32>
    %cst_9 = arith.constant 1.000000e+00 : f32
    %27 = vector.broadcast %cst_9 : f32 to vector<16x1xf32>
    %28 = arith.mulf %27, %26 : vector<16x1xf32>
    %29 = arith.mulf %28, %18 : vector<16x1xf32>
    %c0_10 = arith.constant 0 : index
    %c0_11 = arith.constant 0 : index
    %30 = vector.load %arg3[%c0_10, %c0_11] : memref<16x1xf32, #tpu.memory_space<vmem>>, vector<16x1xf32>
    tpu.vector_store %arg3[%c0_10, %c0_11], %29 {strides = array<i32>} : memref<16x1xf32, #tpu.memory_space<vmem>>, vector<16x1xf32>,
    return
  }
  func.func @transform_0(%arg0: i32) -> (i32, i32) {
    %c0_i32 = arith.constant 0 : i32
    %c0_i32_0 = arith.constant 0 : i32
    return %arg0, %c0_i32 : i32, i32
  }
  func.func @transform_1(%arg0: i32) -> (i32, i32) {
    %c0_i32 = arith.constant 0 : i32
    %c0_i32_0 = arith.constant 0 : i32
    return %arg0, %c0_i32 : i32, i32
  }
  func.func @transform_2(%arg0: i32) -> (i32, i32) {
    %c0_i32 = arith.constant 0 : i32
    %c0_i32_0 = arith.constant 0 : i32
    return %arg0, %c0_i32 : i32, i32
  }
}

</mosaic_0001>

<llo_original>
// kernel: focal_loss.1
$region0: #{focal_loss.1}
  #allocation0 [shape = 'u32[]', space=smem, size = 0x4, offset = 0x4, fixed_abs, tag = 'smem constant byte address 0x4 - core index']
  #allocation1 [shape = 'u32[144,128]{1,0:T(1,128)}', space=vmem, size = 0x12000, scoped, tag = 'internal scratch']
  %s0 = inlined_call_operand.vmem [shape: f32[13,128], index: 0, kind: input, shape index: {}]
  %s1 = inlined_call_operand.vmem [shape: s32[13,1], index: 1, kind: input, shape index: {}]
  %s2 = inlined_call_operand.vmem [shape: f32[13,1], index: 2, kind: output, shape index: {}]
  %s3 = sld [smem:[#allocation0]]
  $region18: #{focal_loss.1} parent=0
    _
  %s5 = ssub.s32 1, %s3
  %s6 = scalar_select 0, %s5, %s3
  // Predicated region
  $region2: #{focal_loss.1} parent=0 // pred_check
    _
  $region3: #{focal_loss.1} parent=0 // pred_check_branch
    %8 = sbr.rel (0) target = $region5
  $region4: #{focal_loss.1} parent=0 // pred_region
    _
  $region5: #{focal_loss.1} parent=0 // pred_fallthru
    _
  // Predicated region
  $region6: #{focal_loss.1} parent=0 // pred_check
    _
  $region7: #{focal_loss.1} parent=0 // pred_check_branch
    %10 = sbr.rel (0) target = $region9
  $region8: #{focal_loss.1} parent=0 // pred_region
    _
  $region9: #{focal_loss.1} parent=0 // pred_fallthru
    _
  %v11 = vld [vmem:[%s0] sm:$0xff]
  %v12 = vld [vmem:[%s0 + $0x8] sm:$0xff]
  %v13 = vld [vmem:[%s1] sm:$0xff]
  %v14 = vld [vmem:[%s1 + $0x8] sm:$0xff]
  %15 = vmax.xlane.f32.xlu0 %v11
  %v16 = vpop.xlane.xlu0 %15
  %17 = vmax.xlane.f32.xlu0 %v12
  %v18 = vpop.xlane.xlu0 %17
  %v19 = vsub.f32 %v11, %v16
  %v20 = vsub.f32 %v12, %v18
  %v21 = vmul.f32 %v19, 1.442695
  %v22 = vpow.pop %v21
  %v23 = vmul.f32 %v20, 1.442695
  %v24 = vpow.pop %v23
  %25 = vadd.xlane.f32.xlu0 %v22
  %v26 = vpop.xlane.xlu0 %25
  %27 = vadd.xlane.f32.xlu0 %v24
  %v28 = vpop.xlane.xlu0 %27
  %v29 = vlog2.pop %v26
  %v30 = vmul.f32 %v29, 0.6931472
  %v31 = vlog2.pop %v28
  %v32 = vmul.f32 %v31, 0.6931472
  %v33 = vadd.f32 %v30, %v16
  %v34 = vadd.f32 %v32, %v18
  %v35 = vlaneseq
  %v36 = vand.u32 %v35, 127
  %37 = vset.pattern.permute.xlu0 0
  %38 = vperm.xlu0 %37, %v13
  %v39 = vpop.permute.xlu0 %38
  %40 = vset.pattern.permute.xlu0 0
  %41 = vperm.xlu0 %40, %v14
  %v42 = vpop.permute.xlu0 %41
  %vm43 = vcmp.eq.s32.totalorder %v36, %v39
  %vm44 = vcmp.eq.s32.totalorder %v36, %v42
  %v45 = vsel %vm43, %v11, 0.0
  %v46 = vsel %vm44, %v12, 0.0
  %47 = vadd.xlane.f32.xlu0 %v45
  %v48 = vpop.xlane.xlu0 %47
  %49 = vadd.xlane.f32.xlu0 %v46
  %v50 = vpop.xlane.xlu0 %49
  %v51 = vsub.f32 %v33, %v48
  %v52 = vsub.f32 %v34, %v50
  %v53 = vsub.f32 0.0, %v51
  %v54 = vsub.f32 0.0, %v52
  %v55 = vmul.f32 %v53, 1.442695
  %v56 = vpow.pop %v55
  %v57 = vmul.f32 %v54, 1.442695
  %v58 = vpow.pop %v57
  %v59 = vsub.f32 1.0, %v56
  %v60 = vsub.f32 1.0, %v58
  %v61 = vmax.f32 %v59, 0.0
  %v62 = vmax.f32 %v60, 0.0
  %v63 = vmul.f32 %v61, %v61
  %v64 = vmul.f32 %v62, %v62
  %v65 = vmul.f32 %v63, %v51
  %v66 = vmul.f32 %v64, %v52
  %vm67 = vcmask 7168
  %68 = vst.msk [vmem:[%s2] sm:$0xff] %vm67, %v65
  %69 = vst.msk [vmem:[%s2 + $0x8] sm:$0xff] %vm67, %v66
  // Predicated region
  $region10: #{focal_loss.1} parent=0 // pred_check
    _
  $region11: #{focal_loss.1} parent=0 // pred_check_branch
    %71 = sbr.rel (0) target = $region13
  $region12: #{focal_loss.1} parent=0 // pred_region
    _
  $region13: #{focal_loss.1} parent=0 // pred_fallthru
    _
  // Predicated region
  $region14: #{focal_loss.1} parent=0 // pred_check
    _
  $region15: #{focal_loss.1} parent=0 // pred_check_branch
    %73 = sbr.rel (0) target = $region17
  $region16: #{focal_loss.1} parent=0 // pred_region
    _
  $region17: #{focal_loss.1} parent=0 // pred_fallthru
    _

</llo_original>
